<compile_context>
chip_gen: v7x
topology: tpu7x:2x2x1
jax: 0.10.0
libtpu: 0.0.40
codegen_flags: <defaults>
</compile_context>

<pallas_src>
import jax
import jax.numpy as jnp
from jax.experimental import pallas as pl
from jax.experimental.pallas import tpu as pltpu


def _variance_norm_kernel(x_ref, a_ref, o_ref):
    # x_ref: (bm, HW) tile of spatial planes; a_ref: (bm, 1) per-row alpha (f32).
    x = x_ref[...]
    xf = x.astype(jnp.float32)                       # no-op for f32 inputs
    hw = x.shape[-1]

    # Single-pass variance: one sweep over the tile produces sum and sum-of-squares.
    # NOTE: less robust than the two-pass form when |mean| >> std; accumulation is
    # f32 and var is clamped at 0 to guard tiny cancellation error.
    s = jnp.sum(xf, axis=-1, keepdims=True)
    ss = jnp.sum(xf * xf, axis=-1, keepdims=True)
    var = (ss - s * s * jnp.float32(1.0 / hw)) / jnp.float32(hw - 1)  # unbiased
    var = jnp.maximum(var, jnp.float32(0.0))

    inv = jax.lax.rsqrt(var + jnp.float32(1e-5))     # EUP slot (free-ish)
    scale = a_ref[...] * inv                         # (bm, 1) per-row scale
    o_ref[...] = (xf * scale).astype(o_ref.dtype)    # single full-tile multiply


def variance_norm_2d(x, alpha):
    """x: (N, C, H, W); alpha: (C,). Returns (N, C, H, W)."""
    N, C, H, W = x.shape
    NC, HW = N * C, H * W

    x2 = x.reshape(NC, HW)
    # one f32 alpha scalar per (n, c) row (kept f32 for accuracy with bf16 inputs)
    a2 = jnp.broadcast_to(alpha[None, :], (N, C)).reshape(NC, 1).astype(jnp.float32)

    itemsize = jnp.dtype(x.dtype).itemsize
    # sublane packing: 8 rows per vreg for 32-bit dtypes, 16 for 16-bit, 32 for 8-bit
    row_align = 8 * max(1, 4 // itemsize)

    # Row tile: target ~4 MiB per x block (multiple of row_align), never larger than
    # the (padded) number of rows.
    target_block_bytes = 4 * 1024 * 1024
    bm = target_block_bytes // max(1, HW * itemsize)
    bm = max(row_align, min(1024, (bm // row_align) * row_align))
    nc_padded = ((NC + row_align - 1) // row_align) * row_align
    bm = min(bm, nc_padded)
    # Keep >= 2 grid steps when possible so v7x can shard the parallel axis
    # across its 2 TensorCores.
    if pl.cdiv(NC, bm) < 2 and NC > row_align:
        half = (NC + 1) // 2
        bm = ((half + row_align - 1) // row_align) * row_align

    grid = (pl.cdiv(NC, bm),)

    # Scoped VMEM budget: double-buffered x + out blocks plus the (lane-padded)
    # alpha block and slack; capped at 48 MiB (~75% of v7x's 64 MiB physical VMEM).
    # TODO(synk): for very large H*W (a bm=row_align block exceeding ~12 MiB) add a
    # second grid axis over HW chunks with scratch sum/sumsq accumulators.
    block_bytes = bm * HW * itemsize
    alpha_block_bytes = bm * 128 * 4          # (bm, 1) f32 block lane-pads to 128
    vmem_bytes = 2 * (2 * block_bytes + alpha_block_bytes) + (8 << 20)
    vmem_bytes = int(min(max(vmem_bytes, 16 << 20), 48 << 20))

    out2 = pl.pallas_call(
        _variance_norm_kernel,
        out_shape=jax.ShapeDtypeStruct((NC, HW), x.dtype),
        grid_spec=pltpu.PrefetchScalarGridSpec(
            num_scalar_prefetch=0,
            grid=grid,
            in_specs=[
                pl.BlockSpec((bm, HW), lambda i: (i, 0)),
                pl.BlockSpec((bm, 1), lambda i: (i, 0)),
            ],
            out_specs=pl.BlockSpec((bm, HW), lambda i: (i, 0)),
        ),
        compiler_params=pltpu.CompilerParams(
            dimension_semantics=("parallel",),
            vmem_limit_bytes=vmem_bytes,
        ),
    )(x2, a2)

    return out2.reshape(N, C, H, W)


def variance_norm_2d_ref(x, alpha):
    """Pure-JAX reference matching torch semantics."""
    var = jnp.var(x.astype(jnp.float32), axis=(2, 3), keepdims=True, ddof=1)
    h = x.astype(jnp.float32) / jnp.sqrt(var + 1e-5)
    out = alpha.reshape(1, -1, 1, 1).astype(jnp.float32) * h
    return out.astype(x.dtype)


if __name__ == "__main__":
    key = jax.random.PRNGKey(0)
    kx, ka = jax.random.split(key)

    N, C, H, W = 2, 4, 16, 16
    x = jax.random.normal(kx, (N, C, H, W), dtype=jnp.float32)
    # alpha ~ N(1, 0.02), deterministic (mirrors self.alpha.data.normal_(1, 0.02))
    alpha = 1.0 + 0.02 * jax.random.normal(ka, (C,), dtype=jnp.float32)

    out = jax.block_until_ready(variance_norm_2d(x, alpha))
    ref = variance_norm_2d_ref(x, alpha)

    assert out.shape == (N, C, H, W)
    assert jnp.allclose(out, ref, atol=1e-5, rtol=1e-4), "mismatch vs reference"

    print("KERNEL_OK")
</pallas_src>

<mosaic_0001>
module attributes {stable_mosaic.version = 11 : i64} {
  func.func @_variance_norm_kernel(%arg0: i32, %arg1: memref<8x256xf32, #tpu.memory_space<vmem>>, %arg2: memref<8x1xf32, #tpu.memory_space<vmem>>, %arg3: memref<8x256xf32, #tpu.memory_space<vmem>>) attributes {dimension_semantics = [#tpu.dimension_semantics<parallel>], iteration_bounds = array<i64: 1>, scalar_prefetch = 0 : i64, scratch_operands = 0 : i64, tpu.core_type = #tpu.core_type<tc>, window_params = [{transform_indices = @transform_0, window_bounds = array<i64: 8, 256>}, {transform_indices = @transform_1, window_bounds = array<i64: 8, 1>}, {transform_indices = @transform_2, window_bounds = array<i64: 8, 256>}]} {
    %c0 = arith.constant 0 : index
    %c0_0 = arith.constant 0 : index
    %0 = vector.load %arg1[%c0, %c0_0] : memref<8x256xf32, #tpu.memory_space<vmem>>, vector<8x256xf32>
    %cst = arith.constant dense<0.000000e+00> : vector<8xf32>
    %1 = vector.multi_reduction <add>, %0, %cst [1] : vector<8x256xf32> to vector<8xf32>
    %2 = vector.shape_cast %1 : vector<8xf32> to vector<8x1xf32>
    %3 = arith.mulf %0, %0 : vector<8x256xf32>
    %cst_1 = arith.constant dense<0.000000e+00> : vector<8xf32>
    %4 = vector.multi_reduction <add>, %3, %cst_1 [1] : vector<8x256xf32> to vector<8xf32>
    %5 = vector.shape_cast %4 : vector<8xf32> to vector<8x1xf32>
    %6 = arith.mulf %2, %2 : vector<8x1xf32>
    %cst_2 = arith.constant 3.906250e-03 : f32
    %7 = vector.broadcast %cst_2 : f32 to vector<8x1xf32>
    %8 = arith.mulf %6, %7 : vector<8x1xf32>
    %9 = arith.subf %5, %8 : vector<8x1xf32>
    %cst_3 = arith.constant 2.550000e+02 : f32
    %10 = vector.broadcast %cst_3 : f32 to vector<8x1xf32>
    %11 = arith.divf %9, %10 : vector<8x1xf32>
    %cst_4 = arith.constant 0.000000e+00 : f32
    %12 = vector.broadcast %cst_4 : f32 to vector<8x1xf32>
    %13 = arith.maximumf %11, %12 : vector<8x1xf32>
    %cst_5 = arith.constant 9.99999974E-6 : f32
    %14 = vector.broadcast %cst_5 : f32 to vector<8x1xf32>
    %15 = arith.addf %13, %14 : vector<8x1xf32>
    %16 = math.rsqrt %15 : vector<8x1xf32>
    %c0_6 = arith.constant 0 : index
    %c0_7 = arith.constant 0 : index
    %17 = vector.load %arg2[%c0_6, %c0_7] : memref<8x1xf32, #tpu.memory_space<vmem>>, vector<8x1xf32>
    %18 = arith.mulf %17, %16 : vector<8x1xf32>
    %19 = vector.broadcast %18 : vector<8x1xf32> to vector<8x256xf32>
    %20 = arith.mulf %0, %19 : vector<8x256xf32>
    %c0_8 = arith.constant 0 : index
    %c0_9 = arith.constant 0 : index
    %21 = vector.load %arg3[%c0_8, %c0_9] : memref<8x256xf32, #tpu.memory_space<vmem>>, vector<8x256xf32>
    tpu.vector_store %arg3[%c0_8, %c0_9], %20 {strides = array<i32>} : memref<8x256xf32, #tpu.memory_space<vmem>>, vector<8x256xf32>,
    return
  }
  func.func @transform_0(%arg0: i32) -> (i32, i32) {
    %c0_i32 = arith.constant 0 : i32
    %c0_i32_0 = arith.constant 0 : i32
    return %arg0, %c0_i32 : i32, i32
  }
  func.func @transform_1(%arg0: i32) -> (i32, i32) {
    %c0_i32 = arith.constant 0 : i32
    %c0_i32_0 = arith.constant 0 : i32
    return %arg0, %c0_i32 : i32, i32
  }
  func.func @transform_2(%arg0: i32) -> (i32, i32) {
    %c0_i32 = arith.constant 0 : i32
    %c0_i32_0 = arith.constant 0 : i32
    return %arg0, %c0_i32 : i32, i32
  }
}

</mosaic_0001>

<llo_original>
// kernel: tpu_custom_call.1
$region0: #{tpu_custom_call.1}
  #allocation0 [shape = 'u32[]', space=smem, size = 0x4, offset = 0x4, fixed_abs, tag = 'smem constant byte address 0x4 - core index']
  #allocation1 [shape = 'u32[144,128]{1,0:T(1,128)}', space=vmem, size = 0x12000, scoped, tag = 'internal scratch']
  %s0 = inlined_call_operand.hbm [shape: f32[8,256], index: 0, kind: input, shape index: {}]
  %s1 = inlined_call_operand.vmem [shape: f32[8,1], index: 1, kind: input, shape index: {}]
  %s2 = inlined_call_operand.hbm [shape: f32[8,256], index: 2, kind: output, shape index: {}]
  %s3 = sld [smem:[#allocation0]]
  $region22: #{tpu_custom_call.1} parent=0
    _
  %s5 = ssub.s32 1, %s3
  %s6 = scalar_select 0, %s5, %s3
  $region1: #{tpu_custom_call.1} parent=0
    #allocation2 [shape = 'u8[8192]{0}', space=vmem, size = 0x2000, scoped, tag = 'input window, operand 0, single buffered']
    #allocation3 [shape = 's32[1]{0}', space=sflag, size = 0x4, scoped, tag = 'scoped memory for tpu_custom_call.1']
    #allocation4 [shape = 's32[1]{0}', space=sflag, size = 0x4, scoped, tag = 'scoped memory for tpu_custom_call.1']
    #allocation5 [shape = 'u8[8192]{0}', space=vmem, size = 0x2000, scoped, tag = 'output window, operand 0, single buffered']
    %7 = vsyncpa [#allocation3], 0
    %8 = vsyncpa [#allocation4], 0
    // Predicated region
    $region2: #{tpu_custom_call.1} parent=1 // pred_check
      _
    $region3: #{tpu_custom_call.1} parent=1 // pred_check_branch
      %10 = sbr.rel (0) target = $region5
    $region4: #{tpu_custom_call.1} parent=1 // pred_region
      %s12 = ssub.s32 256, 256
      %13 = vsyncadd [#allocation3], %s12
      %s15 = sshll.u32 [#allocation2], 4
      %s16 = int_to_ptr.vmem [resolvable:$true] %s15
      %18 = dma.hbm_to_vmem [thread:$0]  %s0, 256, %s16, [#allocation3]
    $region5: #{tpu_custom_call.1} parent=1 // pred_fallthru
      _
    // Predicated region
    $region6: #{tpu_custom_call.1} parent=1 // pred_check
      _
    $region7: #{tpu_custom_call.1} parent=1 // pred_check_branch
      %20 = sbr.rel (0) target = $region9
    $region8: #{tpu_custom_call.1} parent=1 // pred_region
      _
    $region9: #{tpu_custom_call.1} parent=1 // pred_fallthru
      _
    // Predicated region
    $region10: #{tpu_custom_call.1} parent=1 // pred_check
      _
    $region11: #{tpu_custom_call.1} parent=1 // pred_check_branch
      %22 = sbr.rel (0) target = $region13
    $region12: #{tpu_custom_call.1} parent=1 // pred_region
      %23 = dma.done [#allocation3], 256
    $region13: #{tpu_custom_call.1} parent=1 // pred_fallthru
      _
    %v24 = vld [vmem:[#allocation2] sm:$0xff]
    %v25 = vld [vmem:[#allocation2 + $0x8] sm:$0xff]
    %v26 = vadd.f32 %v24, %v25
    %27 = vadd.xlane.f32.xlu0 %v26
    %v28 = vpop.xlane.xlu0 %27
    %v29 = vmul.f32 %v24, %v24
    %v30 = vmul.f32 %v25, %v25
    %v31 = vadd.f32 %v29, %v30
    %32 = vadd.xlane.f32.xlu0 %v31
    %v33 = vpop.xlane.xlu0 %32
    %v34 = vmul.f32 %v28, %v28
    %v35 = vmul.f32 %v34, 0.00390625
    %v36 = vsub.f32 %v33, %v35
    %v37 = vrcp.pop 255.0
    %v38 = vmul.f32 %v36, %v37
    %v39 = vmax.f32 %v38, 0.0
    %v40 = vadd.f32 %v39, 1e-05
    %v41 = vrsqrt.pop %v40
    %v42 = vld [vmem:[%s1] sm:$0xff]
    %v43 = vmul.f32 %v42, %v41
    %45 = vset.pattern.permute.xlu0 0
    %46 = vperm.xlu0 %45, %v43
    %v47 = vpop.permute.xlu0 %46
    %v49 = vmul.f32 %v24, %v47
    %v50 = vmul.f32 %v25, %v47
    %51 = vst [vmem:[#allocation5] sm:$0xff] %v49
    %52 = vst [vmem:[#allocation5 + $0x8] sm:$0xff] %v50
    // Predicated region
    $region14: #{tpu_custom_call.1} parent=1 // pred_check
      _
    $region15: #{tpu_custom_call.1} parent=1 // pred_check_branch
      %54 = sbr.rel (0) target = $region17
    $region16: #{tpu_custom_call.1} parent=1 // pred_region
      %s56 = ssub.s32 256, 256
      %57 = vsyncadd [#allocation4], %s56
      %s59 = sshll.u32 [#allocation5], 4
      %s60 = int_to_ptr.vmem [resolvable:$true] %s59
      %62 = dma.vmem_to_hbm [thread:$0]  %s60, 256, %s2, [#allocation4]
    $region17: #{tpu_custom_call.1} parent=1 // pred_fallthru
      _
    // Predicated region
    $region18: #{tpu_custom_call.1} parent=1 // pred_check
      _
    $region19: #{tpu_custom_call.1} parent=1 // pred_check_branch
      %64 = sbr.rel (0) target = $region21
    $region20: #{tpu_custom_call.1} parent=1 // pred_region
      %65 = dma.done [#allocation4], 256
    $region21: #{tpu_custom_call.1} parent=1 // pred_fallthru
      _
    %66 = vsyncpa [#allocation3], 1
    %67 = vsyncpa [#allocation4], 1

</llo_original>
